<compile_context>
chip_gen: v5e
topology: v5e:2x2
jax: 0.10.0
libtpu: 0.0.40
codegen_flags: <defaults>
</compile_context>

<pallas_src>
import jax
import jax.numpy as jnp
from jax.experimental import pallas as pl
from jax.experimental.pallas import tpu as pltpu

_LANE = 128  # TPU lane width; output / input last dim is always a multiple.


def _round_up(a, b):
    return -(-a // b) * b


def _sq_err_sum_kernel(x_ref, t_ref, o_ref):
    # x_ref, t_ref: (C, TR, LANE) tiles in VMEM; o_ref: (TR, LANE) f32.
    # Unrolled per-channel VPU accumulation (C is small and static): keeps
    # every vreg lane/sublane dense and avoids a cross-sublane XLU reduce.
    c = x_ref.shape[0]
    d = x_ref[0].astype(jnp.float32) - t_ref[0].astype(jnp.float32)
    acc = d * d
    for ci in range(1, c):
        d = x_ref[ci].astype(jnp.float32) - t_ref[ci].astype(jnp.float32)
        acc += d * d
    o_ref[...] = acc


def _choose_row_tile(rows8, tr_target):
    """Pick a row-tile (multiple of 8) and the padded row count it divides."""
    tr_target = max(8, (tr_target // 8) * 8)
    tr_target = min(tr_target, rows8)
    # Largest multiple of 8 that divides rows8 and is <= tr_target: every grid
    # step is then full-width (no ragged masked stores, no extra row padding).
    best = 8
    t = tr_target
    while t >= 8:
        if rows8 % t == 0:
            best = t
            break
        t -= 8
    # If the dividing tile is far below target (pathological row counts), take
    # the target tile and pad rows instead (waste <= one tile of rows).
    if best * 4 < tr_target:
        return tr_target, _round_up(rows8, tr_target)
    return best, rows8


def sq_err_sum_per_pixel(x_nchw, t_nchw, *, target_step_bytes=4 << 20):
    """Pallas kernel: per-pixel sum over C of (x - t)^2 -> (N, H*W) f32.

    Accepts f32 or bf16 inputs (accumulation is always f32 in-kernel).
    """
    n, c, h, w = x_nchw.shape
    hw = h * w
    in_itemsize = jnp.dtype(x_nchw.dtype).itemsize

    # Fold the per-image pixels into (rows, 128) so sublanes are dense.
    rows = pl.cdiv(hw, _LANE)
    rows8 = _round_up(rows, 8)

    # Row-tile sized so each grid step streams ~target_step_bytes of input
    # (2 inputs x C channels x TR x 128 lanes).
    per_row_bytes = 2 * c * _LANE * in_itemsize
    tr_target = max(8, min(rows8, (target_step_bytes // per_row_bytes) // 8 * 8))
    tr, rows_pad = _choose_row_tile(rows8, tr_target)

    # Prefer >= ~8 grid steps (pipelining + v7x two-core sharding) when the
    # problem is big enough; only halve while the tile stays a multiple of 8
    # and still divides rows_pad.
    while n * (rows_pad // tr) < 8 and tr > 8 and tr % 2 == 0 and (tr // 2) % 8 == 0:
        tr //= 2

    hw_pad = rows_pad * _LANE
    x3 = x_nchw.reshape(n, c, hw)
    t3 = t_nchw.reshape(n, c, hw)
    if hw_pad != hw:
        # Pad x and t identically (padded diffs are exactly 0); padded pixels
        # are sliced off after the kernel.  No copy when HW already tiles.
        pad = ((0, 0), (0, 0), (0, hw_pad - hw))
        x3 = jnp.pad(x3, pad)
        t3 = jnp.pad(t3, pad)
    x4 = x3.reshape(n, c, rows_pad, _LANE)
    t4 = t3.reshape(n, c, rows_pad, _LANE)

    grid = (n, rows_pad // tr)

    # Explicit VMEM budget: 2 inputs x 2 buffers x block + 2 output buffers.
    vmem_need = 2 * 2 * c * tr * _LANE * in_itemsize + 2 * tr * _LANE * 4
    vmem_limit = int(min(max(2 * vmem_need, 32 << 20), 40 << 20))

    cost = pl.CostEstimate(
        flops=3 * n * c * rows_pad * _LANE,
        transcendentals=0,
        bytes_accessed=2 * n * c * rows_pad * _LANE * in_itemsize
        + n * rows_pad * _LANE * 4,
    )

    out = pl.pallas_call(
        _sq_err_sum_kernel,
        out_shape=jax.ShapeDtypeStruct((n, rows_pad, _LANE), jnp.float32),
        grid=grid,
        in_specs=[
            pl.BlockSpec((None, c, tr, _LANE), lambda ni, ri: (ni, 0, ri, 0)),
            pl.BlockSpec((None, c, tr, _LANE), lambda ni, ri: (ni, 0, ri, 0)),
        ],
        out_specs=pl.BlockSpec((None, tr, _LANE), lambda ni, ri: (ni, ri, 0)),
        compiler_params=pltpu.CompilerParams(
            # Every grid step writes a distinct output block -> fully parallel
            # (shards across both TensorCores on v7x; harmless on v5e / v6e).
            dimension_semantics=("parallel", "parallel"),
            vmem_limit_bytes=vmem_limit,
        ),
        cost_estimate=cost,
    )(x4, t4)

    out = out.reshape(n, hw_pad)
    if hw_pad != hw:
        out = out[:, :hw]
    return out


class BootstrapLoss:
    """JAX/Pallas port of dlcomp.losses.BootstrapLoss (forward only)."""

    def __init__(self, **cfg):
        self.p = cfg.pop("p")
        # Unused in forward; kept for parity with the torch module's __init__.
        self.nan = jnp.array([float("nan")], dtype=jnp.float32)

    def __call__(self, inp, target):
        n, c, h, w = inp.shape
        total = n * h * w

        # Per-pixel sum of squared differences from the Pallas kernel.
        sq_sum = sq_err_sum_per_pixel(inp, target).reshape(-1)  # (N*H*W,)

        quantile_idx = int((1.0 - self.p) * total)
        k = total - quantile_idx
        if k <= 0:
            # torch.mean of an empty slice is NaN; keep that behavior.
            return jnp.float32(float("nan"))

        # TODO(synk): for large images jax.lax.top_k over N*H*W elements can
        # dominate wall clock; a per-tile histogram emitted from the Pallas
        # kernel + threshold/masked-mean second pass would avoid the global
        # selection.  Kept exact top_k here (mean of the largest k equals
        # mean(sorted[quantile_idx:])).
        top_vals, _ = jax.lax.top_k(sq_sum, k)

        # Fold the constant 255^2 / C back in (exact: positive scaling
        # commutes with the quantile selection and the mean).
        scale = (255.0 * 255.0) / float(c)
        return jnp.mean(top_vals) * scale


def _reference_loss(x, t, p):
    # Pure-JAX port of the torch reference.
    c = x.shape[1]
    mse = ((x * 255.0) - (t * 255.0)) ** 2
    mse_pixel = jnp.mean(mse, axis=1).reshape(-1)
    sorted_ref = jnp.sort(mse_pixel)
    qi = int((1.0 - p) * sorted_ref.shape[0])
    return jnp.mean(sorted_ref[qi:])


if __name__ == "__main__":
    key = jax.random.PRNGKey(0)

    loss_fn = BootstrapLoss(p=0.2)

    # Case 1: NCHW, small shapes (HW gets padded up to the 8x128 row tile).
    k1, k2, k3, k4 = jax.random.split(key, 4)
    x = jax.random.uniform(k1, (2, 4, 16, 16), dtype=jnp.float32)
    t = jax.random.uniform(k2, (2, 4, 16, 16), dtype=jnp.float32)
    loss = loss_fn(x, t)
    jax.block_until_ready(loss)
    ref = _reference_loss(x, t, 0.2)
    assert jnp.allclose(loss, ref, rtol=1e-5, atol=1e-5), (loss, ref)

    # Case 2: odd spatial size / 3 channels (exercises lane padding + slicing).
    x2 = jax.random.uniform(k3, (2, 3, 12, 12), dtype=jnp.float32)
    t2 = jax.random.uniform(k4, (2, 3, 12, 12), dtype=jnp.float32)
    loss2 = loss_fn(x2, t2)
    jax.block_until_ready(loss2)
    ref2 = _reference_loss(x2, t2, 0.2)
    assert jnp.allclose(loss2, ref2, rtol=1e-5, atol=1e-5), (loss2, ref2)

    print("KERNEL_OK")
</pallas_src>

<mosaic_0001>
module attributes {stable_mosaic.version = 11 : i64} {
  func.func @_sq_err_sum_kernel(%arg0: i32, %arg1: i32, %arg2: memref<1x4x8x128xf32, #tpu.memory_space<vmem>>, %arg3: memref<1x4x8x128xf32, #tpu.memory_space<vmem>>, %arg4: memref<1x8x128xf32, #tpu.memory_space<vmem>>) attributes {dimension_semantics = [#tpu.dimension_semantics<parallel>, #tpu.dimension_semantics<parallel>], iteration_bounds = array<i64: 2, 1>, scalar_prefetch = 0 : i64, scratch_operands = 0 : i64, tpu.core_type = #tpu.core_type<tc>, window_params = [{transform_indices = @transform_0, window_bounds = array<i64: 1, 4, 8, 128>}, {transform_indices = @transform_1, window_bounds = array<i64: 1, 4, 8, 128>}, {transform_indices = @transform_2, window_bounds = array<i64: 1, 8, 128>}]} {
    %c0 = arith.constant 0 : index
    %c0_0 = arith.constant 0 : index
    %c0_1 = arith.constant 0 : index
    %c0_2 = arith.constant 0 : index
    %0 = vector.load %arg2[%c0, %c0_0, %c0_1, %c0_2] : memref<1x4x8x128xf32, #tpu.memory_space<vmem>>, vector<1x1x8x128xf32>
    %1 = vector.shape_cast %0 : vector<1x1x8x128xf32> to vector<8x128xf32>
    %c0_3 = arith.constant 0 : index
    %c0_4 = arith.constant 0 : index
    %c0_5 = arith.constant 0 : index
    %c0_6 = arith.constant 0 : index
    %2 = vector.load %arg3[%c0_3, %c0_4, %c0_5, %c0_6] : memref<1x4x8x128xf32, #tpu.memory_space<vmem>>, vector<1x1x8x128xf32>
    %3 = vector.shape_cast %2 : vector<1x1x8x128xf32> to vector<8x128xf32>
    %4 = arith.subf %1, %3 : vector<8x128xf32>
    %5 = arith.mulf %4, %4 : vector<8x128xf32>
    %c0_7 = arith.constant 0 : index
    %c1 = arith.constant 1 : index
    %c0_8 = arith.constant 0 : index
    %c0_9 = arith.constant 0 : index
    %6 = vector.load %arg2[%c0_7, %c1, %c0_8, %c0_9] : memref<1x4x8x128xf32, #tpu.memory_space<vmem>>, vector<1x1x8x128xf32>
    %7 = vector.shape_cast %6 : vector<1x1x8x128xf32> to vector<8x128xf32>
    %c0_10 = arith.constant 0 : index
    %c1_11 = arith.constant 1 : index
    %c0_12 = arith.constant 0 : index
    %c0_13 = arith.constant 0 : index
    %8 = vector.load %arg3[%c0_10, %c1_11, %c0_12, %c0_13] : memref<1x4x8x128xf32, #tpu.memory_space<vmem>>, vector<1x1x8x128xf32>
    %9 = vector.shape_cast %8 : vector<1x1x8x128xf32> to vector<8x128xf32>
    %10 = arith.subf %7, %9 : vector<8x128xf32>
    %11 = arith.mulf %10, %10 : vector<8x128xf32>
    %12 = arith.addf %5, %11 : vector<8x128xf32>
    %c0_14 = arith.constant 0 : index
    %c2 = arith.constant 2 : index
    %c0_15 = arith.constant 0 : index
    %c0_16 = arith.constant 0 : index
    %13 = vector.load %arg2[%c0_14, %c2, %c0_15, %c0_16] : memref<1x4x8x128xf32, #tpu.memory_space<vmem>>, vector<1x1x8x128xf32>
    %14 = vector.shape_cast %13 : vector<1x1x8x128xf32> to vector<8x128xf32>
    %c0_17 = arith.constant 0 : index
    %c2_18 = arith.constant 2 : index
    %c0_19 = arith.constant 0 : index
    %c0_20 = arith.constant 0 : index
    %15 = vector.load %arg3[%c0_17, %c2_18, %c0_19, %c0_20] : memref<1x4x8x128xf32, #tpu.memory_space<vmem>>, vector<1x1x8x128xf32>
    %16 = vector.shape_cast %15 : vector<1x1x8x128xf32> to vector<8x128xf32>
    %17 = arith.subf %14, %16 : vector<8x128xf32>
    %18 = arith.mulf %17, %17 : vector<8x128xf32>
    %19 = arith.addf %12, %18 : vector<8x128xf32>
    %c0_21 = arith.constant 0 : index
    %c3 = arith.constant 3 : index
    %c0_22 = arith.constant 0 : index
    %c0_23 = arith.constant 0 : index
    %20 = vector.load %arg2[%c0_21, %c3, %c0_22, %c0_23] : memref<1x4x8x128xf32, #tpu.memory_space<vmem>>, vector<1x1x8x128xf32>
    %21 = vector.shape_cast %20 : vector<1x1x8x128xf32> to vector<8x128xf32>
    %c0_24 = arith.constant 0 : index
    %c3_25 = arith.constant 3 : index
    %c0_26 = arith.constant 0 : index
    %c0_27 = arith.constant 0 : index
    %22 = vector.load %arg3[%c0_24, %c3_25, %c0_26, %c0_27] : memref<1x4x8x128xf32, #tpu.memory_space<vmem>>, vector<1x1x8x128xf32>
    %23 = vector.shape_cast %22 : vector<1x1x8x128xf32> to vector<8x128xf32>
    %24 = arith.subf %21, %23 : vector<8x128xf32>
    %25 = arith.mulf %24, %24 : vector<8x128xf32>
    %26 = arith.addf %19, %25 : vector<8x128xf32>
    %c0_28 = arith.constant 0 : index
    %c0_29 = arith.constant 0 : index
    %c0_30 = arith.constant 0 : index
    %27 = vector.load %arg4[%c0_28, %c0_29, %c0_30] : memref<1x8x128xf32, #tpu.memory_space<vmem>>, vector<1x8x128xf32>
    %28 = vector.shape_cast %27 : vector<1x8x128xf32> to vector<8x128xf32>
    %29 = vector.shape_cast %26 : vector<8x128xf32> to vector<1x8x128xf32>
    tpu.vector_store %arg4[%c0_28, %c0_29, %c0_30], %29 {strides = array<i32>} : memref<1x8x128xf32, #tpu.memory_space<vmem>>, vector<1x8x128xf32>,
    return
  }
  func.func @transform_0(%arg0: i32, %arg1: i32) -> (i32, i32, i32, i32) {
    %c0_i32 = arith.constant 0 : i32
    %c0_i32_0 = arith.constant 0 : i32
    %c0_i32_1 = arith.constant 0 : i32
    return %arg0, %c0_i32, %arg1, %c0_i32_0 : i32, i32, i32, i32
  }
  func.func @transform_1(%arg0: i32, %arg1: i32) -> (i32, i32, i32, i32) {
    %c0_i32 = arith.constant 0 : i32
    %c0_i32_0 = arith.constant 0 : i32
    %c0_i32_1 = arith.constant 0 : i32
    return %arg0, %c0_i32, %arg1, %c0_i32_0 : i32, i32, i32, i32
  }
  func.func @transform_2(%arg0: i32, %arg1: i32) -> (i32, i32, i32) {
    %c0_i32 = arith.constant 0 : i32
    %c0_i32_0 = arith.constant 0 : i32
    return %arg0, %arg1, %c0_i32 : i32, i32, i32
  }
}

</mosaic_0001>

<llo_original>
// kernel: tpu_custom_call.1
$region0: #{tpu_custom_call.1}
  #allocation0 [shape = 'u32[]', space=smem, size = 0x4, offset = 0x4, fixed_abs, tag = 'smem constant byte address 0x4 - core index']
  #allocation1 [shape = 'u32[72,128]{1,0:T(1,128)}', space=vmem, size = 0x9000, scoped, tag = 'internal scratch']
  %s0 = inlined_call_operand.hbm [shape: f32[2,4,8,128], index: 0, kind: input, shape index: {}]
  %s1 = inlined_call_operand.hbm [shape: f32[2,4,8,128], index: 1, kind: input, shape index: {}]
  %s2 = inlined_call_operand.hbm [shape: f32[2,8,128], index: 2, kind: output, shape index: {}]
  %s3 = sld [smem:[#allocation0]]
  $region49: #{tpu_custom_call.1} parent=0
    _
  %s5 = ssub.s32 1, %s3
  %s6 = scalar_select 0, %s5, %s3
  $region1: #{tpu_custom_call.1} parent=0
    #allocation2 [shape = 'u8[32768]{0}', space=vmem, size = 0x8000, scoped, tag = 'input window, operand 0']
    #allocation3 [shape = 's32[2]{0}', space=sflag, size = 0x8, scoped, tag = 'scoped memory for tpu_custom_call.1']
    #allocation4 [shape = 's32[2]{0}', space=sflag, size = 0x8, scoped, tag = 'scoped memory for tpu_custom_call.1']
    #allocation5 [shape = 'u8[32768]{0}', space=vmem, size = 0x8000, scoped, tag = 'input window, operand 1']
    #allocation6 [shape = 's32[2]{0}', space=sflag, size = 0x8, scoped, tag = 'scoped memory for tpu_custom_call.1']
    #allocation7 [shape = 'u8[8192]{0}', space=vmem, size = 0x2000, scoped, tag = 'output window, operand 0']
    %7 = vsyncpa [#allocation3], 0
    %s8 = scalar_lea.sflag [#allocation3], 1
    %9 = vsyncpa %s8, 0
    %10 = vsyncpa [#allocation6], 0
    %s11 = scalar_lea.sflag [#allocation6], 1
    %12 = vsyncpa %s11, 0
    %13 = vsyncpa [#allocation4], 0
    %s14 = scalar_lea.sflag [#allocation4], 1
    %15 = vsyncpa %s14, 0
    loop: start=0, step=1, limit=4
    $region2: #{tpu_custom_call.1} parent=1 // loop_pre_header
      _
    $region3: #{tpu_custom_call.1} parent=1 // loop_header
      %s17 = sphi 0, %s21
      %p18 = scmp.ge.s32.totalorder %s17, 4
      %s24 = sphi 0, %s36
      %s25 = sphi 0, %s32
      %s26 = sphi 0, %s24
      %s27 = sphi 0, %s25
      %s28 = sphi 0, %s26
      %s29 = sphi 0, %s27
      %s41 = sphi 0, %s43
      %s44 = sphi 0, %s41
      %s45 = sphi 0, %s44
      %s61 = sphi 0, %s45
      %s69 = sphi 0, %s71
      %s72 = sphi 0, %s69
      %s73 = sphi 0, %s72
      %s89 = sphi 0, %s73
      %s97 = sphi 0, %s99
      %s100 = sphi 0, %s97
      %s101 = sphi 0, %s100
      %s117 = sphi 0, %s101
    $region4: #{tpu_custom_call.1} parent=1 // loop_header_branch
      %20 = sbr.rel (%p18) target = $region8
    $region5: #{tpu_custom_call.1} parent=1 // loop_body
      %s22 = ssub.s32 %s17, 1
      %s23 = ssub.s32 %s17, 2
      %s30 = sadd.s32 1, %s25
      %p31 = scmp.ge.s32.totalorder %s30, 1
      %s32 = scalar_select %p31, 0, %s30
      %s33 = sadd.s32 1, %s24
      %s34 = scalar_select %p31, %s33, %s24
      %p35 = scmp.ge.s32.totalorder %s34, 2
      %s36 = scalar_select %p35, 0, %s34
      %s37 = ssub.s32 %s24, %s36
      %s38 = ssub.s32 %s25, %s32
      %s39 = sor.u32 %s37, %s38
      %p40 = scmp.eq.s32.totalorder %s39, 0
      %s42 = sadd.s32 %s41, 1
      %s43 = scalar_select %p40, %s41, %s42
      %p46 = pneg %p40
      %p47 = scmp.eq.s32.totalorder %s17, 1
      %p48 = por %p46, %p47
      %p49 = scmp.ne.s32.totalorder %s41, %s44
      %p50 = scmp.eq.s32.totalorder %s17, 0
      %p51 = por %p49, %p50
      %p52 = scmp.ne.s32.totalorder %s41, %s44
      %p53 = scmp.eq.s32.totalorder %s22, 1
      %p54 = por %p52, %p53
      %p55 = scmp.ne.s32.totalorder %s44, %s45
      %p56 = scmp.eq.s32.totalorder %s22, 0
      %p57 = por %p55, %p56
      %p58 = scmp.ne.s32.totalorder %s44, %s45
      %p59 = scmp.eq.s32.totalorder %s23, 1
      %p60 = por %p58, %p59
      %p62 = scmp.ne.s32.totalorder %s45, %s61
      %p63 = scmp.eq.s32.totalorder %s23, 0
      %p64 = por %p62, %p63
      %s65 = ssub.s32 %s24, %s36
      %s66 = ssub.s32 %s25, %s32
      %s67 = sor.u32 %s65, %s66
      %p68 = scmp.eq.s32.totalorder %s67, 0
      %s70 = sadd.s32 %s69, 1
      %s71 = scalar_select %p68, %s69, %s70
      %p74 = pneg %p68
      %p75 = scmp.eq.s32.totalorder %s17, 1
      %p76 = por %p74, %p75
      %p77 = scmp.ne.s32.totalorder %s69, %s72
      %p78 = scmp.eq.s32.totalorder %s17, 0
      %p79 = por %p77, %p78
      %p80 = scmp.ne.s32.totalorder %s69, %s72
      %p81 = scmp.eq.s32.totalorder %s22, 1
      %p82 = por %p80, %p81
      %p83 = scmp.ne.s32.totalorder %s72, %s73
      %p84 = scmp.eq.s32.totalorder %s22, 0
      %p85 = por %p83, %p84
      %p86 = scmp.ne.s32.totalorder %s72, %s73
      %p87 = scmp.eq.s32.totalorder %s23, 1
      %p88 = por %p86, %p87
      %p90 = scmp.ne.s32.totalorder %s73, %s89
      %p91 = scmp.eq.s32.totalorder %s23, 0
      %p92 = por %p90, %p91
      %s93 = ssub.s32 %s24, %s36
      %s94 = ssub.s32 %s25, %s32
      %s95 = sor.u32 %s93, %s94
      %p96 = scmp.eq.s32.totalorder %s95, 0
      %s98 = sadd.s32 %s97, 1
      %s99 = scalar_select %p96, %s97, %s98
      %p102 = pneg %p96
      %p103 = scmp.eq.s32.totalorder %s17, 1
      %p104 = por %p102, %p103
      %p105 = scmp.ne.s32.totalorder %s97, %s100
      %p106 = scmp.eq.s32.totalorder %s17, 0
      %p107 = por %p105, %p106
      %p108 = scmp.ne.s32.totalorder %s97, %s100
      %p109 = scmp.eq.s32.totalorder %s22, 1
      %p110 = por %p108, %p109
      %p111 = scmp.ne.s32.totalorder %s100, %s101
      %p112 = scmp.eq.s32.totalorder %s22, 0
      %p113 = por %p111, %p112
      %p114 = scmp.ne.s32.totalorder %s100, %s101
      %p115 = scmp.eq.s32.totalorder %s23, 1
      %p116 = por %p114, %p115
      %p118 = scmp.ne.s32.totalorder %s101, %s117
      %p119 = scmp.eq.s32.totalorder %s23, 0
      %p120 = por %p118, %p119
      %p121 = scmp.le.s32.totalorder 1, %s17
      %p122 = scmp.lt.s32.totalorder %s17, 3
      %p123 = pnand %p121, %p122
      %p124 = pneg %p123
      // Predicated region
      $region9: #{tpu_custom_call.1} parent=5 // pred_check
        _
      $region10: #{tpu_custom_call.1} parent=5 // pred_check_branch
        %126 = sbr.rel (%p123) target = $region12
      $region11: #{tpu_custom_call.1} parent=5 // pred_region
        %s127 = ssub.s32 %s17, 1
      $region12: #{tpu_custom_call.1} parent=5 // pred_fallthru
        _
      %p128 = scmp.lt.s32.totalorder %s17, 2
      // Predicated region
      $region13: #{tpu_custom_call.1} parent=5 // pred_check
        %p129 = pneg %p128
      $region14: #{tpu_custom_call.1} parent=5 // pred_check_branch
        %131 = sbr.rel (%p129) target = $region16
      $region15: #{tpu_custom_call.1} parent=5 // pred_region
        // Predicated region
        $region17: #{tpu_custom_call.1} parent=15 // pred_check
          %p132 = pneg %p51
        $region18: #{tpu_custom_call.1} parent=15 // pred_check_branch
          %134 = sbr.rel (%p132) target = $region20
        $region19: #{tpu_custom_call.1} parent=15 // pred_region
          %s135 = sand.u32 %s41, 1
          %s136 = scalar_lea.sflag [#allocation3], %s135
          %s137 = sand.u32 %s41, 1
          %s138 = smul.addr %s137, 32
          %s139 = scalar_lea.vmem [#allocation2], %s138
          %141 = vsyncadd %s136, 0
          %s142 = smul.addr %s24, 4
          %s143 = sadd.s32 %s25, %s142
          %s144 = smul.addr %s143, 8
          %s145 = scalar_lea.hbm %s0, %s144
          %s146 = sshll.u32 %s145, 4
          %s147 = int_to_ptr.hbm [resolvable:$true] %s146
          %s148 = sshll.u32 %s139, 4
          %s149 = int_to_ptr.vmem [resolvable:$true] %s148
          %154 = dma.hbm_to_vmem [thread:$0]  %s147, 512, %s149, %s136, 128, 128, 8
        $region20: #{tpu_custom_call.1} parent=15 // pred_fallthru
          _
        // Predicated region
        $region21: #{tpu_custom_call.1} parent=15 // pred_check
          %p155 = pneg %p79
        $region22: #{tpu_custom_call.1} parent=15 // pred_check_branch
          %157 = sbr.rel (%p155) target = $region24
        $region23: #{tpu_custom_call.1} parent=15 // pred_region
          %s158 = sand.u32 %s69, 1
          %s159 = scalar_lea.sflag [#allocation6], %s158
          %s160 = sand.u32 %s69, 1
          %s161 = smul.addr %s160, 32
          %s162 = scalar_lea.vmem [#allocation5], %s161
          %164 = vsyncadd %s159, 0
          %s165 = smul.addr %s24, 4
          %s166 = sadd.s32 %s25, %s165
          %s167 = smul.addr %s166, 8
          %s168 = scalar_lea.hbm %s1, %s167
          %s169 = sshll.u32 %s168, 4
          %s170 = int_to_ptr.hbm [resolvable:$true] %s169
          %s171 = sshll.u32 %s162, 4
          %s172 = int_to_ptr.vmem [resolvable:$true] %s171
          %177 = dma.hbm_to_vmem [thread:$0]  %s170, 512, %s172, %s159, 128, 128, 8
        $region24: #{tpu_custom_call.1} parent=15 // pred_fallthru
          _
      $region16: #{tpu_custom_call.1} parent=5 // pred_fallthru
        _
      %p178 = scmp.le.s32.totalorder 1, %s17
      %p179 = scmp.lt.s32.totalorder %s17, 3
      %p180 = pnand %p178, %p179
      %p181 = pneg %p180
      // Predicated region
      $region25: #{tpu_custom_call.1} parent=5 // pred_check
        _
      $region26: #{tpu_custom_call.1} parent=5 // pred_check_branch
        %183 = sbr.rel (%p180) target = $region28
      $region27: #{tpu_custom_call.1} parent=5 // pred_region
        %s184 = ssub.s32 %s17, 1
        %s185 = sand.u32 %s44, 1
        %s186 = scalar_lea.sflag [#allocation3], %s185
        %s187 = sand.u32 %s44, 1
        %s188 = smul.addr %s187, 32
        %s189 = scalar_lea.vmem [#allocation2], %s188
        // Predicated region
        $region29: #{tpu_custom_call.1} parent=27 // pred_check
          %p190 = pneg %p57
        $region30: #{tpu_custom_call.1} parent=27 // pred_check_branch
          %192 = sbr.rel (%p190) target = $region32
        $region31: #{tpu_custom_call.1} parent=27 // pred_region
          %194 = dma.done %s186, 512
        $region32: #{tpu_custom_call.1} parent=27 // pred_fallthru
          _
        %s195 = sand.u32 %s72, 1
        %s196 = scalar_lea.sflag [#allocation6], %s195
        %s197 = sand.u32 %s72, 1
        %s198 = smul.addr %s197, 32
        %s199 = scalar_lea.vmem [#allocation5], %s198
        // Predicated region
        $region33: #{tpu_custom_call.1} parent=27 // pred_check
          %p200 = pneg %p85
        $region34: #{tpu_custom_call.1} parent=27 // pred_check_branch
          %202 = sbr.rel (%p200) target = $region36
        $region35: #{tpu_custom_call.1} parent=27 // pred_region
          %204 = dma.done %s196, 512
        $region36: #{tpu_custom_call.1} parent=27 // pred_fallthru
          _
        %s205 = sand.u32 %s44, 1
        %s206 = scalar_lea.sflag [#allocation3], %s205
        %s207 = sand.u32 %s44, 1
        %s208 = smul.addr %s207, 32
        %s209 = scalar_lea.vmem [#allocation2], %s208
        %p210 = pneg %p57
        %p211 = pneg %p54
        %s212 = sand.u32 %s72, 1
        %s213 = scalar_lea.sflag [#allocation6], %s212
        %s214 = sand.u32 %s72, 1
        %s215 = smul.addr %s214, 32
        %s216 = scalar_lea.vmem [#allocation5], %s215
        %p217 = pneg %p85
        %p218 = pneg %p82
        %p219 = pneg %p113
        %p220 = pneg %p110
        %s221 = sand.u32 %s100, 1
        %s222 = scalar_lea.sflag [#allocation4], %s221
        %s223 = sand.u32 %s100, 1
        %s224 = smul.addr %s223, 8
        %s225 = scalar_lea.vmem [#allocation7], %s224
        %v226 = vld [vmem:[%s189] sm:$0xff]
        %v227 = vld [vmem:[%s199] sm:$0xff]
        %v228 = vsub.f32 %v226, %v227
        %v229 = vmul.f32 %v228, %v228
        %s230 = scalar_lea.vmem %s189, 8 [#allocation2]
        %v231 = vld [vmem:[%s230] sm:$0xff]
        %s232 = scalar_lea.vmem %s199, 8 [#allocation5]
        %v233 = vld [vmem:[%s232] sm:$0xff]
        %v234 = vsub.f32 %v231, %v233
        %v235 = vmul.f32 %v234, %v234
        %v236 = vadd.f32 %v229, %v235
        %s237 = scalar_lea.vmem %s189, 16 [#allocation2]
        %v238 = vld [vmem:[%s237] sm:$0xff]
        %s239 = scalar_lea.vmem %s199, 16 [#allocation5]
        %v240 = vld [vmem:[%s239] sm:$0xff]
        %v241 = vsub.f32 %v238, %v240
        %v242 = vmul.f32 %v241, %v241
        %v243 = vadd.f32 %v236, %v242
        %s244 = scalar_lea.vmem %s189, 24 [#allocation2]
        %v245 = vld [vmem:[%s244] sm:$0xff]
        %s246 = scalar_lea.vmem %s199, 24 [#allocation5]
        %v247 = vld [vmem:[%s246] sm:$0xff]
        %v248 = vsub.f32 %v245, %v247
        %v249 = vmul.f32 %v248, %v248
        %v250 = vadd.f32 %v243, %v249
        %251 = vst [vmem:[%s225] sm:$0xff] %v250
        %s252 = sand.u32 %s100, 1
        %s253 = scalar_lea.sflag [#allocation4], %s252
        %s254 = sand.u32 %s100, 1
        %s255 = smul.addr %s254, 8
        %s256 = scalar_lea.vmem [#allocation7], %s255
        // Predicated region
        $region37: #{tpu_custom_call.1} parent=27 // pred_check
          %p257 = pneg %p110
        $region38: #{tpu_custom_call.1} parent=27 // pred_check_branch
          %259 = sbr.rel (%p257) target = $region40
        $region39: #{tpu_custom_call.1} parent=27 // pred_region
          %261 = vsyncadd %s253, 0
          %s262 = sadd.s32 %s27, %s26
          %s263 = smul.addr %s262, 8
          %s264 = scalar_lea.hbm %s2, %s263
          %s266 = sshll.u32 %s256, 4
          %s267 = int_to_ptr.vmem [resolvable:$true] %s266
          %s268 = sshll.u32 %s264, 4
          %s269 = int_to_ptr.hbm [resolvable:$true] %s268
          %271 = dma.vmem_to_hbm [thread:$0]  %s267, 128, %s269, %s253
        $region40: #{tpu_custom_call.1} parent=27 // pred_fallthru
          _
      $region28: #{tpu_custom_call.1} parent=5 // pred_fallthru
        _
      %p272 = scmp.le.s32.totalorder 2, %s17
      // Predicated region
      $region41: #{tpu_custom_call.1} parent=5 // pred_check
        %p273 = pneg %p272
      $region42: #{tpu_custom_call.1} parent=5 // pred_check_branch
        %275 = sbr.rel (%p273) target = $region44
      $region43: #{tpu_custom_call.1} parent=5 // pred_region
        %s276 = ssub.s32 %s17, 2
        // Predicated region
        $region45: #{tpu_custom_call.1} parent=43 // pred_check
          %p277 = pneg %p116
        $region46: #{tpu_custom_call.1} parent=43 // pred_check_branch
          %279 = sbr.rel (%p277) target = $region48
        $region47: #{tpu_custom_call.1} parent=43 // pred_region
          %s280 = sand.u32 %s101, 1
          %s281 = scalar_lea.sflag [#allocation4], %s280
          %s282 = sand.u32 %s101, 1
          %s283 = smul.addr %s282, 8
          %s284 = scalar_lea.vmem [#allocation7], %s283
          %286 = dma.done %s281, 128
        $region48: #{tpu_custom_call.1} parent=43 // pred_fallthru
          _
      $region44: #{tpu_custom_call.1} parent=5 // pred_fallthru
        _
    $region6: #{tpu_custom_call.1} parent=1 // loop_footer
      %s21 = sadd.s32 1, %s17
    $region7: #{tpu_custom_call.1} parent=1 // loop_footer_branch
      %16 = sbr.rel target = $region3
    $region8: #{tpu_custom_call.1} parent=1 // loop_exit
      _
    %287 = vsyncpa [#allocation3], 1
    %s288 = scalar_lea.sflag [#allocation3], 1
    %289 = vsyncpa %s288, 1
    %290 = vsyncpa [#allocation6], 1
    %s291 = scalar_lea.sflag [#allocation6], 1
    %292 = vsyncpa %s291, 1
    %293 = vsyncpa [#allocation4], 1
    %s294 = scalar_lea.sflag [#allocation4], 1
    %295 = vsyncpa %s294, 1

</llo_original>
